<compile_context>
chip_gen: v7x
topology: tpu7x:2x2x1
jax: 0.10.0
libtpu: 0.0.40
codegen_flags: <defaults>
</compile_context>

<pallas_src>
import math

import jax
import jax.numpy as jnp
from jax.experimental import pallas as pl
from jax.experimental.pallas import tpu as pltpu

HIDDEN = 128
LANE = 128
SUBLANE_PACK = 16  # bf16 sublane packing for the output tile


def dqn_kernel(x_ref, w1_ref, b12_ref, w2_ref, w3_ref, b3_ref, o_ref):
    # In-kernel f32 -> bf16 cast of the activation tile (sits in slack under MXU).
    x = x_ref[...].astype(jnp.bfloat16)
    # fc1 + relu : bf16 operands on the MXU, f32 accumulation / bias / ReLU.
    h1 = jnp.dot(x, w1_ref[...], preferred_element_type=jnp.float32)
    h1 = jnp.maximum(h1 + b12_ref[0:1, :], 0.0).astype(jnp.bfloat16)
    # fc2 + relu
    h2 = jnp.dot(h1, w2_ref[...], preferred_element_type=jnp.float32)
    h2 = jnp.maximum(h2 + b12_ref[1:2, :], 0.0).astype(jnp.bfloat16)
    # fc3 (no activation); lane-dense (padded) bf16 output store.
    out = jnp.dot(h2, w3_ref[...], preferred_element_type=jnp.float32)
    o_ref[...] = (out + b3_ref[...]).astype(o_ref.dtype)


def _round_up(n, m):
    return ((n + m - 1) // m) * m


def prepare_dqn_params(params):
    """One-time cast/pad of the parameters so per-call work is only the pallas_call."""
    w1, b1, w2, b2, w3, b3 = (params[k] for k in ("w1", "b1", "w2", "b2", "w3", "b3"))
    out_dim = w3.shape[1]
    out_pad = _round_up(out_dim, LANE)
    bf16 = jnp.bfloat16
    return {
        "w1": w1.astype(bf16),                                          # (in, 128) bf16
        "b12": jnp.concatenate([b1, b2], axis=0).astype(jnp.float32),   # (2, 128) f32
        "w2": w2.astype(bf16),                                          # (128, 128) bf16
        "w3": jnp.pad(w3, ((0, 0), (0, out_pad - out_dim))).astype(bf16),  # lane-padded
        "b3": jnp.pad(b3, ((0, 0), (0, out_pad - out_dim))).astype(jnp.float32),
        "out_dim": out_dim,                                             # python int
    }


def dqn_forward(x, prepared, *, tb=128):
    """x: (B, input_dim) f32.  prepared: output of prepare_dqn_params."""
    w1 = prepared["w1"]
    b12 = prepared["b12"]
    w2 = prepared["w2"]
    w3 = prepared["w3"]
    b3 = prepared["b3"]
    out_dim = prepared["out_dim"]

    B, in_dim = x.shape
    out_pad = w3.shape[1]

    # --- batch tiling: only pad to the bf16 sublane pack, not to tb ------------
    b_pad = _round_up(B, SUBLANE_PACK)
    if b_pad <= tb:
        tb_eff = b_pad
    else:
        tb_eff = tb
        b_pad = _round_up(b_pad, tb_eff)
    # v7x: give the "parallel" batch axis >= 2 grid steps so both TensorCores get
    # work, as long as the half-tile stays 16-row aligned.
    if b_pad // tb_eff == 1 and tb_eff % (2 * SUBLANE_PACK) == 0:
        tb_eff //= 2

    grid = (b_pad // tb_eff,)

    x_p = x if b_pad == B else jnp.pad(x, ((0, b_pad - B), (0, 0)))

    # --- VMEM budget from the real tiled footprint (double-buffered), + margin --
    def nbytes(shape, dtype):
        return math.prod(shape) * jnp.dtype(dtype).itemsize

    footprint = (
        2 * nbytes((tb_eff, in_dim), jnp.float32)        # x tile (double-buffered, f32)
        + 2 * nbytes((tb_eff, out_pad), jnp.bfloat16)    # out tile (double-buffered, bf16)
        + 2 * (nbytes(w1.shape, jnp.bfloat16) + nbytes(w2.shape, jnp.bfloat16)
               + nbytes(w3.shape, jnp.bfloat16)
               + nbytes(b12.shape, jnp.float32) + nbytes(b3.shape, jnp.float32))
        + 6 * nbytes((tb_eff, HIDDEN), jnp.float32)      # live h1/h2 (f32 + bf16 copies)
        + 2 * nbytes((tb_eff, out_pad), jnp.float32)     # f32 pre-store accumulator
    )
    vmem_limit = min(int(max(8 << 20, 2 * footprint)), 64 << 20)

    # --- BlockSpecs: x/out tiled over batch, weights/biases VMEM-resident --------
    in_specs = [
        pl.BlockSpec((tb_eff, in_dim), lambda i: (i, 0)),    # x (f32, cast in-kernel)
        pl.BlockSpec((in_dim, HIDDEN), lambda i: (0, 0)),    # w1
        pl.BlockSpec((2, HIDDEN), lambda i: (0, 0)),         # b1 / b2 stacked
        pl.BlockSpec((HIDDEN, HIDDEN), lambda i: (0, 0)),    # w2
        pl.BlockSpec((HIDDEN, out_pad), lambda i: (0, 0)),   # w3 (lane-padded)
        pl.BlockSpec((1, out_pad), lambda i: (0, 0)),        # b3 (lane-padded)
    ]
    out_spec = pl.BlockSpec((tb_eff, out_pad), lambda i: (i, 0))

    out = pl.pallas_call(
        dqn_kernel,
        out_shape=jax.ShapeDtypeStruct((b_pad, out_pad), jnp.bfloat16),
        grid=grid,
        in_specs=in_specs,
        out_specs=out_spec,
        compiler_params=pltpu.CompilerParams(
            dimension_semantics=("parallel",),   # v7x: shard batch across both TCs
            vmem_limit_bytes=vmem_limit,
        ),
    )(x_p, w1, b12, w2, w3, b3)

    # Slice off batch / lane padding and upcast to f32 for downstream use.
    return out[:B, :out_dim].astype(jnp.float32)


def init_dqn_params(key, input_dim, output_dim, hidden=HIDDEN):
    """Deterministic init mimicking nn.Linear default: U(-1/sqrt(fan_in), 1/sqrt(fan_in))."""
    ks = jax.random.split(key, 6)

    def linear(kw, kb, fan_in, fan_out):
        bound = 1.0 / jnp.sqrt(fan_in)
        w = jax.random.uniform(kw, (fan_in, fan_out), jnp.float32, -bound, bound)
        b = jax.random.uniform(kb, (1, fan_out), jnp.float32, -bound, bound)
        return w, b

    w1, b1 = linear(ks[0], ks[1], input_dim, hidden)
    w2, b2 = linear(ks[2], ks[3], hidden, hidden)
    w3, b3 = linear(ks[4], ks[5], hidden, output_dim)
    return {"w1": w1, "b1": b1, "w2": w2, "b2": b2, "w3": w3, "b3": b3}


def dqn_reference_f32(x, p):
    h1 = jnp.maximum(x @ p["w1"] + p["b1"], 0.0)
    h2 = jnp.maximum(h1 @ p["w2"] + p["b2"], 0.0)
    return h2 @ p["w3"] + p["b3"]


def dqn_reference_bf16(x, p):
    """Reference mirroring the kernel's mixed precision (bf16 MXU operands, f32 acc)."""
    bf = jnp.bfloat16
    h1 = jnp.dot(x.astype(bf), p["w1"].astype(bf), preferred_element_type=jnp.float32)
    h1 = jnp.maximum(h1 + p["b1"], 0.0)
    h2 = jnp.dot(h1.astype(bf), p["w2"].astype(bf), preferred_element_type=jnp.float32)
    h2 = jnp.maximum(h2 + p["b2"], 0.0)
    out = jnp.dot(h2.astype(bf), p["w3"].astype(bf), preferred_element_type=jnp.float32)
    return out + p["b3"]


if __name__ == "__main__":
    key = jax.random.PRNGKey(0)
    k_params, k_x = jax.random.split(key)

    batch = 8
    input_dim = 32
    output_dim = 8

    params = init_dqn_params(k_params, input_dim, output_dim)
    prepared = prepare_dqn_params(params)   # one-time cast/pad, reused every forward
    x = jax.random.normal(k_x, (batch, input_dim), jnp.float32)

    out = dqn_forward(x, prepared)
    out = jax.block_until_ready(out)
    assert out.shape == (batch, output_dim)

    # Numerics check vs. a bf16-MXU / f32-acc reference (kernel output also rounds
    # through bf16 on store, hence the slightly looser tolerance) ...
    ref_bf16 = dqn_reference_bf16(x, params)
    assert jnp.allclose(out, ref_bf16, atol=2e-2, rtol=2e-2), "mismatch vs bf16 reference"
    # ... and a sanity check against the pure-f32 reference.
    ref_f32 = dqn_reference_f32(x, params)
    assert jnp.allclose(out, ref_f32, atol=8e-2, rtol=8e-2), "mismatch vs f32 reference"

    print("KERNEL_OK")
</pallas_src>

<mosaic_0001>
module attributes {stable_mosaic.version = 11 : i64} {
  func.func @dqn_kernel(%arg0: i32, %arg1: memref<16x32xf32, #tpu.memory_space<vmem>>, %arg2: memref<32x128xbf16, #tpu.memory_space<vmem>>, %arg3: memref<2x128xf32, #tpu.memory_space<vmem>>, %arg4: memref<128x128xbf16, #tpu.memory_space<vmem>>, %arg5: memref<128x128xbf16, #tpu.memory_space<vmem>>, %arg6: memref<1x128xf32, #tpu.memory_space<vmem>>, %arg7: memref<16x128xbf16, #tpu.memory_space<vmem>>) attributes {dimension_semantics = [#tpu.dimension_semantics<parallel>], iteration_bounds = array<i64: 1>, scalar_prefetch = 0 : i64, scratch_operands = 0 : i64, tpu.core_type = #tpu.core_type<tc>, window_params = [{transform_indices = @transform_0, window_bounds = array<i64: 16, 32>}, {pipeline_mode = #tpu.pipeline_mode<synchronous>, transform_indices = @transform_1, window_bounds = array<i64: 32, 128>}, {pipeline_mode = #tpu.pipeline_mode<synchronous>, transform_indices = @transform_2, window_bounds = array<i64: 2, 128>}, {pipeline_mode = #tpu.pipeline_mode<synchronous>, transform_indices = @transform_3, window_bounds = array<i64: 128, 128>}, {pipeline_mode = #tpu.pipeline_mode<synchronous>, transform_indices = @transform_4, window_bounds = array<i64: 128, 128>}, {pipeline_mode = #tpu.pipeline_mode<synchronous>, transform_indices = @transform_5, window_bounds = array<i64: 1, 128>}, {transform_indices = @transform_6, window_bounds = array<i64: 16, 128>}]} {
    %c0 = arith.constant 0 : index
    %c0_0 = arith.constant 0 : index
    %0 = vector.load %arg1[%c0, %c0_0] : memref<16x32xf32, #tpu.memory_space<vmem>>, vector<16x32xf32>
    %1 = arith.truncf %0 : vector<16x32xf32> to vector<16x32xbf16>
    %c0_1 = arith.constant 0 : index
    %c0_2 = arith.constant 0 : index
    %2 = vector.load %arg2[%c0_1, %c0_2] : memref<32x128xbf16, #tpu.memory_space<vmem>>, vector<32x128xbf16>
    %cst = arith.constant dense<0.000000e+00> : vector<16x128xf32>
    %3 = tpu.matmul %1, %2, %cst {dimension_numbers = #tpu.dot_dimension_numbers<[1], [0], [0], [1], [0, 0, 1, 1], [], []>} : vector<16x32xbf16>, vector<32x128xbf16>, vector<16x128xf32> -> vector<16x128xf32>
    %c0_3 = arith.constant 0 : index
    %c0_4 = arith.constant 0 : index
    %4 = vector.load %arg3[%c0_3, %c0_4] : memref<2x128xf32, #tpu.memory_space<vmem>>, vector<1x128xf32>
    %5 = vector.broadcast %4 : vector<1x128xf32> to vector<16x128xf32>
    %6 = arith.addf %3, %5 : vector<16x128xf32>
    %cst_5 = arith.constant 0.000000e+00 : f32
    %7 = vector.broadcast %cst_5 : f32 to vector<16x128xf32>
    %8 = arith.maximumf %6, %7 : vector<16x128xf32>
    %9 = arith.truncf %8 : vector<16x128xf32> to vector<16x128xbf16>
    %c0_6 = arith.constant 0 : index
    %c0_7 = arith.constant 0 : index
    %10 = vector.load %arg4[%c0_6, %c0_7] : memref<128x128xbf16, #tpu.memory_space<vmem>>, vector<128x128xbf16>
    %cst_8 = arith.constant dense<0.000000e+00> : vector<16x128xf32>
    %11 = tpu.matmul %9, %10, %cst_8 {dimension_numbers = #tpu.dot_dimension_numbers<[1], [0], [0], [1], [0, 0, 1, 1], [], []>} : vector<16x128xbf16>, vector<128x128xbf16>, vector<16x128xf32> -> vector<16x128xf32>
    %c1 = arith.constant 1 : index
    %c0_9 = arith.constant 0 : index
    %12 = vector.load %arg3[%c1, %c0_9] : memref<2x128xf32, #tpu.memory_space<vmem>>, vector<1x128xf32>
    %13 = vector.broadcast %12 : vector<1x128xf32> to vector<16x128xf32>
    %14 = arith.addf %11, %13 : vector<16x128xf32>
    %cst_10 = arith.constant 0.000000e+00 : f32
    %15 = vector.broadcast %cst_10 : f32 to vector<16x128xf32>
    %16 = arith.maximumf %14, %15 : vector<16x128xf32>
    %17 = arith.truncf %16 : vector<16x128xf32> to vector<16x128xbf16>
    %c0_11 = arith.constant 0 : index
    %c0_12 = arith.constant 0 : index
    %18 = vector.load %arg5[%c0_11, %c0_12] : memref<128x128xbf16, #tpu.memory_space<vmem>>, vector<128x128xbf16>
    %cst_13 = arith.constant dense<0.000000e+00> : vector<16x128xf32>
    %19 = tpu.matmul %17, %18, %cst_13 {dimension_numbers = #tpu.dot_dimension_numbers<[1], [0], [0], [1], [0, 0, 1, 1], [], []>} : vector<16x128xbf16>, vector<128x128xbf16>, vector<16x128xf32> -> vector<16x128xf32>
    %c0_14 = arith.constant 0 : index
    %c0_15 = arith.constant 0 : index
    %20 = vector.load %arg6[%c0_14, %c0_15] : memref<1x128xf32, #tpu.memory_space<vmem>>, vector<1x128xf32>
    %21 = vector.broadcast %20 : vector<1x128xf32> to vector<16x128xf32>
    %22 = arith.addf %19, %21 : vector<16x128xf32>
    %23 = arith.truncf %22 : vector<16x128xf32> to vector<16x128xbf16>
    %c0_16 = arith.constant 0 : index
    %c0_17 = arith.constant 0 : index
    %24 = vector.load %arg7[%c0_16, %c0_17] : memref<16x128xbf16, #tpu.memory_space<vmem>>, vector<16x128xbf16>
    tpu.vector_store %arg7[%c0_16, %c0_17], %23 {strides = array<i32>} : memref<16x128xbf16, #tpu.memory_space<vmem>>, vector<16x128xbf16>,
    return
  }
  func.func @transform_0(%arg0: i32) -> (i32, i32) {
    %c0_i32 = arith.constant 0 : i32
    %c0_i32_0 = arith.constant 0 : i32
    return %arg0, %c0_i32 : i32, i32
  }
  func.func @transform_1(%arg0: i32) -> (i32, i32) {
    %c0_i32 = arith.constant 0 : i32
    %c0_i32_0 = arith.constant 0 : i32
    %c0_i32_1 = arith.constant 0 : i32
    return %c0_i32, %c0_i32_0 : i32, i32
  }
  func.func @transform_2(%arg0: i32) -> (i32, i32) {
    %c0_i32 = arith.constant 0 : i32
    %c0_i32_0 = arith.constant 0 : i32
    %c0_i32_1 = arith.constant 0 : i32
    return %c0_i32, %c0_i32_0 : i32, i32
  }
  func.func @transform_3(%arg0: i32) -> (i32, i32) {
    %c0_i32 = arith.constant 0 : i32
    %c0_i32_0 = arith.constant 0 : i32
    %c0_i32_1 = arith.constant 0 : i32
    return %c0_i32, %c0_i32_0 : i32, i32
  }
  func.func @transform_4(%arg0: i32) -> (i32, i32) {
    %c0_i32 = arith.constant 0 : i32
    %c0_i32_0 = arith.constant 0 : i32
    %c0_i32_1 = arith.constant 0 : i32
    return %c0_i32, %c0_i32_0 : i32, i32
  }
  func.func @transform_5(%arg0: i32) -> (i32, i32) {
    %c0_i32 = arith.constant 0 : i32
    %c0_i32_0 = arith.constant 0 : i32
    %c0_i32_1 = arith.constant 0 : i32
    return %c0_i32, %c0_i32_0 : i32, i32
  }
  func.func @transform_6(%arg0: i32) -> (i32, i32) {
    %c0_i32 = arith.constant 0 : i32
    %c0_i32_0 = arith.constant 0 : i32
    return %arg0, %c0_i32 : i32, i32
  }
}

</mosaic_0001>

<llo_original>
// kernel: tpu_custom_call.1
$region0: #{tpu_custom_call.1}
  #allocation0 [shape = 'u32[]', space=smem, size = 0x4, offset = 0x4, fixed_abs, tag = 'smem constant byte address 0x4 - core index']
  #allocation1 [shape = 'u32[144,128]{1,0:T(1,128)}', space=vmem, size = 0x12000, scoped, tag = 'internal scratch']
  %s0 = inlined_call_operand.hbm [shape: f32[16,32], index: 0, kind: input, shape index: {}]
  %s1 = inlined_call_operand.hbm [shape: bf16[32,128], index: 1, kind: input, shape index: {}]
  %s2 = inlined_call_operand.vmem [shape: f32[2,128], index: 2, kind: input, shape index: {}]
  %s3 = inlined_call_operand.hbm [shape: bf16[128,128], index: 3, kind: input, shape index: {}]
  %s4 = inlined_call_operand.hbm [shape: bf16[128,128], index: 4, kind: input, shape index: {}]
  %s5 = inlined_call_operand.vmem [shape: f32[1,128], index: 5, kind: input, shape index: {}]
  %s6 = inlined_call_operand.hbm [shape: bf16[16,128], index: 6, kind: output, shape index: {}]
  %s7 = sld [smem:[#allocation0]]
  $region50: #{tpu_custom_call.1} parent=0
    _
  %s9 = ssub.s32 1, %s7
  %s10 = scalar_select 0, %s9, %s7
  $region1: #{tpu_custom_call.1} parent=0
    #allocation2 [shape = 'u8[8192]{0}', space=vmem, size = 0x2000, scoped, tag = 'input window, operand 0, single buffered']
    #allocation3 [shape = 's32[1]{0}', space=sflag, size = 0x4, scoped, tag = 'scoped memory for tpu_custom_call.1']
    #allocation4 [shape = 's32[1]{0}', space=sflag, size = 0x4, scoped, tag = 'scoped memory for tpu_custom_call.1']
    #allocation5 [shape = 'u8[8192]{0}', space=vmem, size = 0x2000, scoped, tag = 'input window, operand 1, single buffered']
    #allocation6 [shape = 's32[1]{0}', space=sflag, size = 0x4, scoped, tag = 'scoped memory for tpu_custom_call.1']
    #allocation7 [shape = 'u8[32768]{0}', space=vmem, size = 0x8000, scoped, tag = 'input window, operand 3, single buffered']
    #allocation8 [shape = 'u8[32768]{0}', space=vmem, size = 0x8000, scoped, tag = 'input window, operand 4, single buffered']
    #allocation9 [shape = 's32[1]{0}', space=sflag, size = 0x4, scoped, tag = 'scoped memory for tpu_custom_call.1']
    #allocation10 [shape = 'u8[4096]{0}', space=vmem, size = 0x1000, scoped, tag = 'output window, operand 0, single buffered']
    %11 = vsyncpa [#allocation3], 0
    %12 = vsyncpa [#allocation6], 0
    %13 = vsyncpa [#allocation9], 0
    %14 = vsyncpa [#allocation4], 0
    // Predicated region
    $region2: #{tpu_custom_call.1} parent=1 // pred_check
      _
    $region3: #{tpu_custom_call.1} parent=1 // pred_check_branch
      %16 = sbr.rel (0) target = $region5
    $region4: #{tpu_custom_call.1} parent=1 // pred_region
      %s18 = ssub.s32 256, 256
      %19 = vsyncadd [#allocation3], %s18
      %s20 = sshll.u32 [#allocation2], 4
      %s21 = int_to_ptr.vmem [resolvable:$true] %s20
      %26 = dma.hbm_to_vmem [thread:$0]  %s0, 256, %s21, [#allocation3], 128, 128, 8
    $region5: #{tpu_custom_call.1} parent=1 // pred_fallthru
      _
    // Predicated region
    $region6: #{tpu_custom_call.1} parent=1 // pred_check
      _
    $region7: #{tpu_custom_call.1} parent=1 // pred_check_branch
      %28 = sbr.rel (0) target = $region9
    $region8: #{tpu_custom_call.1} parent=1 // pred_region
      %s30 = ssub.s32 256, 256
      %31 = vsyncadd [#allocation6], %s30
      %s32 = sshll.u32 [#allocation5], 4
      %s33 = int_to_ptr.vmem [resolvable:$true] %s32
      %38 = dma.hbm_to_vmem [thread:$0]  %s1, 256, %s33, [#allocation6], 64, 64, 4
    $region9: #{tpu_custom_call.1} parent=1 // pred_fallthru
      _
    // Predicated region
    $region10: #{tpu_custom_call.1} parent=1 // pred_check
      _
    $region11: #{tpu_custom_call.1} parent=1 // pred_check_branch
      %40 = sbr.rel (0) target = $region13
    $region12: #{tpu_custom_call.1} parent=1 // pred_region
      _
    $region13: #{tpu_custom_call.1} parent=1 // pred_fallthru
      _
    // Predicated region
    $region14: #{tpu_custom_call.1} parent=1 // pred_check
      _
    $region15: #{tpu_custom_call.1} parent=1 // pred_check_branch
      %42 = sbr.rel (0) target = $region17
    $region16: #{tpu_custom_call.1} parent=1 // pred_region
      %s44 = ssub.s32 1024, 1024
      %45 = vsyncadd [#allocation6], %s44
      %s46 = sshll.u32 [#allocation7], 4
      %s47 = int_to_ptr.vmem [resolvable:$true] %s46
      %52 = dma.hbm_to_vmem [thread:$0]  %s3, 1024, %s47, [#allocation6], 64, 64, 4
    $region17: #{tpu_custom_call.1} parent=1 // pred_fallthru
      _
    // Predicated region
    $region18: #{tpu_custom_call.1} parent=1 // pred_check
      _
    $region19: #{tpu_custom_call.1} parent=1 // pred_check_branch
      %54 = sbr.rel (0) target = $region21
    $region20: #{tpu_custom_call.1} parent=1 // pred_region
      %s56 = ssub.s32 1024, 1024
      %57 = vsyncadd [#allocation9], %s56
      %s58 = sshll.u32 [#allocation8], 4
      %s59 = int_to_ptr.vmem [resolvable:$true] %s58
      %64 = dma.hbm_to_vmem [thread:$0]  %s4, 1024, %s59, [#allocation9], 64, 64, 4
    $region21: #{tpu_custom_call.1} parent=1 // pred_fallthru
      _
    // Predicated region
    $region22: #{tpu_custom_call.1} parent=1 // pred_check
      _
    $region23: #{tpu_custom_call.1} parent=1 // pred_check_branch
      %66 = sbr.rel (0) target = $region25
    $region24: #{tpu_custom_call.1} parent=1 // pred_region
      _
    $region25: #{tpu_custom_call.1} parent=1 // pred_fallthru
      _
    // Predicated region
    $region26: #{tpu_custom_call.1} parent=1 // pred_check
      _
    $region27: #{tpu_custom_call.1} parent=1 // pred_check_branch
      %68 = sbr.rel (0) target = $region29
    $region28: #{tpu_custom_call.1} parent=1 // pred_region
      %69 = dma.done [#allocation3], 256
    $region29: #{tpu_custom_call.1} parent=1 // pred_fallthru
      _
    // Predicated region
    $region30: #{tpu_custom_call.1} parent=1 // pred_check
      _
    $region31: #{tpu_custom_call.1} parent=1 // pred_check_branch
      %71 = sbr.rel (0) target = $region33
    $region32: #{tpu_custom_call.1} parent=1 // pred_region
      %72 = dma.done [#allocation6], 256
    $region33: #{tpu_custom_call.1} parent=1 // pred_fallthru
      _
    // Predicated region
    $region34: #{tpu_custom_call.1} parent=1 // pred_check
      _
    $region35: #{tpu_custom_call.1} parent=1 // pred_check_branch
      %74 = sbr.rel (0) target = $region37
    $region36: #{tpu_custom_call.1} parent=1 // pred_region
      %75 = dma.done [#allocation6], 1024
    $region37: #{tpu_custom_call.1} parent=1 // pred_fallthru
      _
    // Predicated region
    $region38: #{tpu_custom_call.1} parent=1 // pred_check
      _
    $region39: #{tpu_custom_call.1} parent=1 // pred_check_branch
      %77 = sbr.rel (0) target = $region41
    $region40: #{tpu_custom_call.1} parent=1 // pred_region
      %78 = dma.done [#allocation9], 1024
    $region41: #{tpu_custom_call.1} parent=1 // pred_fallthru
      _
    %v80 = vld [vmem:[#allocation2] sm:$0xff]
    %v81 = vld [vmem:[#allocation2 + $0x8] sm:$0xff]
    %v82 = vpack.c.bf16 %v81, %v80
    %v83 = vld [vmem:[#allocation5] sm:$0xf]
    %v84 = vld [vmem:[#allocation5 + $0x4] sm:$0xf]
    %v85 = vld [vmem:[#allocation5 + $0x8] sm:$0xf]
    %v86 = vld [vmem:[#allocation5 + $0xc] sm:$0xf]
    %v87 = vld [vmem:[%s2] sm:$0x1]
    %v88 = vlaneseq
    %v89 = vshrl.u32 %v88, 7
    %v90 = vsub.s32 0, %v89
    %v91 = vrot.slane %v87, %v90
    %v96 = vunpack.c.l.b16 %v83
    %v97 = vunpack.c.l.b16 %v84
    %v98 = vunpack.c.l.b16 %v85
    %v99 = vunpack.c.l.b16 %v86
    %v100 = vpack.c.b16 %v97, %v96
    %v101 = vpack.c.b16 %v99, %v98
    %vm104 = vcmask 261120
    %v106 = vsel %vm104, %v82, 0
    %108 = vmatprep.subr.bf16.mxu0 0
    %109 = vmatpush1.bf16.msra.mxu0 %v100
    %110 = vmatprep.subr.bf16.mxu0 0
    %111 = vmatpush1.bf16.msra.mxu0 %v101
    %112 = vmatprep.subr.bf16.mxu0 0
    %113 = vmatpush1.bf16.msra.mxu0 0
    %114 = vmatprep.subr.bf16.mxu0 0
    %115 = vmatpush1.bf16.msra.mxu0 0
    %116 = vmatprep.subr.bf16.mxu0 0
    %117 = vmatpush1.bf16.msra.mxu0 0
    %118 = vmatprep.subr.bf16.mxu0 0
    %119 = vmatpush1.bf16.msra.mxu0 0
    %120 = vmatprep.subr.bf16.mxu0 0
    %121 = vmatpush1.bf16.msra.mxu0 0
    %122 = vmatprep.subr.bf16.mxu0 0
    %123 = vmatpush1.bf16.msra.mxu0 0
    %124 = vmatprep.subr.bf16.mxu0 0
    %125 = vmatpush1.bf16.msra.mxu0 0
    %126 = vmatprep.subr.bf16.mxu0 0
    %127 = vmatpush1.bf16.msra.mxu0 0
    %128 = vmatprep.subr.bf16.mxu0 0
    %129 = vmatpush1.bf16.msra.mxu0 0
    %130 = vmatprep.subr.bf16.mxu0 0
    %131 = vmatpush1.bf16.msra.mxu0 0
    %132 = vmatprep.subr.bf16.mxu0 0
    %133 = vmatpush1.bf16.msra.mxu0 0
    %134 = vmatprep.subr.bf16.mxu0 0
    %135 = vmatpush1.bf16.msra.mxu0 0
    %136 = vmatprep.subr.bf16.mxu0 0
    %137 = vmatpush1.bf16.msra.mxu0 0
    %138 = vmatprep.subr.bf16.mxu0 0
    %139 = vmatpush1.bf16.msra.mxu0 0
    %140 = vmatprep.mubr.bf16.mxu0 0
    %141 = vmatmul.mubr.bf16.gmra.mrb[0].mxu0 %v106
    %v142 = vpop.f32.mrb[0].mxu0
    %v143 = vadd.f32 %v91, %v142
    %v144 = vpop.f32.mrb[0].mxu0
    %v145 = vpop.f32.mrb[0].mxu0
    %v146 = vadd.f32 %v91, %v145
    %v147 = vpop.f32.mrb[0].mxu0
    %148 = vdwg.mxu0
    %v149 = vmax.f32 %v143, 0.0
    %v150 = vmax.f32 %v146, 0.0
    %v151 = vpack.c.bf16 %v150, %v149
    %v152 = vld [vmem:[#allocation7] sm:$0xf]
    %v153 = vld [vmem:[#allocation7 + $0x4] sm:$0xf]
    %v154 = vld [vmem:[#allocation7 + $0x8] sm:$0xf]
    %v155 = vld [vmem:[#allocation7 + $0xc] sm:$0xf]
    %v156 = vld [vmem:[#allocation7 + $0x10] sm:$0xf]
    %v157 = vld [vmem:[#allocation7 + $0x14] sm:$0xf]
    %v158 = vld [vmem:[#allocation7 + $0x18] sm:$0xf]
    %v159 = vld [vmem:[#allocation7 + $0x1c] sm:$0xf]
    %v160 = vld [vmem:[#allocation7 + $0x20] sm:$0xf]
    %v161 = vld [vmem:[#allocation7 + $0x24] sm:$0xf]
    %v162 = vld [vmem:[#allocation7 + $0x28] sm:$0xf]
    %v163 = vld [vmem:[#allocation7 + $0x2c] sm:$0xf]
    %v164 = vld [vmem:[#allocation7 + $0x30] sm:$0xf]
    %v165 = vld [vmem:[#allocation7 + $0x34] sm:$0xf]
    %v166 = vld [vmem:[#allocation7 + $0x38] sm:$0xf]
    %v167 = vld [vmem:[#allocation7 + $0x3c] sm:$0xf]
    %v168 = vld [vmem:[%s2 + $0x1] sm:$0x1]
    %v169 = vlaneseq
    %v170 = vshrl.u32 %v169, 7
    %v171 = vsub.s32 0, %v170
    %v172 = vrot.slane %v168, %v171
    %v189 = vunpack.c.l.b16 %v152
    %v190 = vunpack.c.l.b16 %v153
    %v191 = vunpack.c.l.b16 %v154
    %v192 = vunpack.c.l.b16 %v155
    %v193 = vunpack.c.l.b16 %v156
    %v194 = vunpack.c.l.b16 %v157
    %v195 = vunpack.c.l.b16 %v158
    %v196 = vunpack.c.l.b16 %v159
    %v197 = vunpack.c.l.b16 %v160
    %v198 = vunpack.c.l.b16 %v161
    %v199 = vunpack.c.l.b16 %v162
    %v200 = vunpack.c.l.b16 %v163
    %v201 = vunpack.c.l.b16 %v164
    %v202 = vunpack.c.l.b16 %v165
    %v203 = vunpack.c.l.b16 %v166
    %v204 = vunpack.c.l.b16 %v167
    %v205 = vpack.c.b16 %v190, %v189
    %v206 = vpack.c.b16 %v192, %v191
    %v207 = vpack.c.b16 %v194, %v193
    %v208 = vpack.c.b16 %v196, %v195
    %v209 = vpack.c.b16 %v198, %v197
    %v210 = vpack.c.b16 %v200, %v199
    %v211 = vpack.c.b16 %v202, %v201
    %v212 = vpack.c.b16 %v204, %v203
    %221 = vmatprep.subr.bf16.mxu0 0
    %222 = vmatpush1.bf16.msra.mxu0 %v205
    %223 = vmatprep.subr.bf16.mxu0 0
    %224 = vmatpush1.bf16.msra.mxu0 %v206
    %225 = vmatprep.subr.bf16.mxu0 0
    %226 = vmatpush1.bf16.msra.mxu0 %v207
    %227 = vmatprep.subr.bf16.mxu0 0
    %228 = vmatpush1.bf16.msra.mxu0 %v208
    %229 = vmatprep.subr.bf16.mxu0 0
    %230 = vmatpush1.bf16.msra.mxu0 %v209
    %231 = vmatprep.subr.bf16.mxu0 0
    %232 = vmatpush1.bf16.msra.mxu0 %v210
    %233 = vmatprep.subr.bf16.mxu0 0
    %234 = vmatpush1.bf16.msra.mxu0 %v211
    %235 = vmatprep.subr.bf16.mxu0 0
    %236 = vmatpush1.bf16.msra.mxu0 %v212
    %237 = vmatprep.subr.bf16.mxu0 0
    %238 = vmatpush1.bf16.msra.mxu0 0
    %239 = vmatprep.subr.bf16.mxu0 0
    %240 = vmatpush1.bf16.msra.mxu0 0
    %241 = vmatprep.subr.bf16.mxu0 0
    %242 = vmatpush1.bf16.msra.mxu0 0
    %243 = vmatprep.subr.bf16.mxu0 0
    %244 = vmatpush1.bf16.msra.mxu0 0
    %245 = vmatprep.subr.bf16.mxu0 0
    %246 = vmatpush1.bf16.msra.mxu0 0
    %247 = vmatprep.subr.bf16.mxu0 0
    %248 = vmatpush1.bf16.msra.mxu0 0
    %249 = vmatprep.subr.bf16.mxu0 0
    %250 = vmatpush1.bf16.msra.mxu0 0
    %251 = vmatprep.subr.bf16.mxu0 0
    %252 = vmatpush1.bf16.msra.mxu0 0
    %253 = vmatprep.mubr.bf16.mxu0 0
    %254 = vmatmul.mubr.bf16.gmra.mrb[0].mxu0 %v151
    %v255 = vpop.f32.mrb[0].mxu0
    %v256 = vadd.f32 %v172, %v255
    %v257 = vpop.f32.mrb[0].mxu0
    %v258 = vpop.f32.mrb[0].mxu0
    %v259 = vadd.f32 %v172, %v258
    %v260 = vpop.f32.mrb[0].mxu0
    %261 = vdwg.mxu0
    %v262 = vmax.f32 %v256, 0.0
    %v263 = vmax.f32 %v259, 0.0
    %v264 = vpack.c.bf16 %v263, %v262
    %v265 = vld [vmem:[#allocation8] sm:$0xf]
    %v266 = vld [vmem:[#allocation8 + $0x4] sm:$0xf]
    %v267 = vld [vmem:[#allocation8 + $0x8] sm:$0xf]
    %v268 = vld [vmem:[#allocation8 + $0xc] sm:$0xf]
    %v269 = vld [vmem:[#allocation8 + $0x10] sm:$0xf]
    %v270 = vld [vmem:[#allocation8 + $0x14] sm:$0xf]
    %v271 = vld [vmem:[#allocation8 + $0x18] sm:$0xf]
    %v272 = vld [vmem:[#allocation8 + $0x1c] sm:$0xf]
    %v273 = vld [vmem:[#allocation8 + $0x20] sm:$0xf]
    %v274 = vld [vmem:[#allocation8 + $0x24] sm:$0xf]
    %v275 = vld [vmem:[#allocation8 + $0x28] sm:$0xf]
    %v276 = vld [vmem:[#allocation8 + $0x2c] sm:$0xf]
    %v277 = vld [vmem:[#allocation8 + $0x30] sm:$0xf]
    %v278 = vld [vmem:[#allocation8 + $0x34] sm:$0xf]
    %v279 = vld [vmem:[#allocation8 + $0x38] sm:$0xf]
    %v280 = vld [vmem:[#allocation8 + $0x3c] sm:$0xf]
    %v281 = vld [vmem:[%s5] sm:$0x1]
    %v283 = vlaneseq
    %v284 = vshrl.u32 %v283, 7
    %v285 = vsub.s32 0, %v284
    %v286 = vrot.slane %v281, %v285
    %v304 = vunpack.c.l.b16 %v265
    %v305 = vunpack.c.l.b16 %v266
    %v306 = vunpack.c.l.b16 %v267
    %v307 = vunpack.c.l.b16 %v268
    %v308 = vunpack.c.l.b16 %v269
    %v309 = vunpack.c.l.b16 %v270
    %v310 = vunpack.c.l.b16 %v271
    %v311 = vunpack.c.l.b16 %v272
    %v312 = vunpack.c.l.b16 %v273
    %v313 = vunpack.c.l.b16 %v274
    %v314 = vunpack.c.l.b16 %v275
    %v315 = vunpack.c.l.b16 %v276
    %v316 = vunpack.c.l.b16 %v277
    %v317 = vunpack.c.l.b16 %v278
    %v318 = vunpack.c.l.b16 %v279
    %v319 = vunpack.c.l.b16 %v280
    %v320 = vpack.c.b16 %v305, %v304
    %v321 = vpack.c.b16 %v307, %v306
    %v322 = vpack.c.b16 %v309, %v308
    %v323 = vpack.c.b16 %v311, %v310
    %v324 = vpack.c.b16 %v313, %v312
    %v325 = vpack.c.b16 %v315, %v314
    %v326 = vpack.c.b16 %v317, %v316
    %v327 = vpack.c.b16 %v319, %v318
    %336 = vmatprep.subr.bf16.mxu0 0
    %337 = vmatpush1.bf16.msra.mxu0 %v320
    %338 = vmatprep.subr.bf16.mxu0 0
    %339 = vmatpush1.bf16.msra.mxu0 %v321
    %340 = vmatprep.subr.bf16.mxu0 0
    %341 = vmatpush1.bf16.msra.mxu0 %v322
    %342 = vmatprep.subr.bf16.mxu0 0
    %343 = vmatpush1.bf16.msra.mxu0 %v323
    %344 = vmatprep.subr.bf16.mxu0 0
    %345 = vmatpush1.bf16.msra.mxu0 %v324
    %346 = vmatprep.subr.bf16.mxu0 0
    %347 = vmatpush1.bf16.msra.mxu0 %v325
    %348 = vmatprep.subr.bf16.mxu0 0
    %349 = vmatpush1.bf16.msra.mxu0 %v326
    %350 = vmatprep.subr.bf16.mxu0 0
    %351 = vmatpush1.bf16.msra.mxu0 %v327
    %352 = vmatprep.subr.bf16.mxu0 0
    %353 = vmatpush1.bf16.msra.mxu0 0
    %354 = vmatprep.subr.bf16.mxu0 0
    %355 = vmatpush1.bf16.msra.mxu0 0
    %356 = vmatprep.subr.bf16.mxu0 0
    %357 = vmatpush1.bf16.msra.mxu0 0
    %358 = vmatprep.subr.bf16.mxu0 0
    %359 = vmatpush1.bf16.msra.mxu0 0
    %360 = vmatprep.subr.bf16.mxu0 0
    %361 = vmatpush1.bf16.msra.mxu0 0
    %362 = vmatprep.subr.bf16.mxu0 0
    %363 = vmatpush1.bf16.msra.mxu0 0
    %364 = vmatprep.subr.bf16.mxu0 0
    %365 = vmatpush1.bf16.msra.mxu0 0
    %366 = vmatprep.subr.bf16.mxu0 0
    %367 = vmatpush1.bf16.msra.mxu0 0
    %368 = vmatprep.mubr.bf16.mxu0 0
    %369 = vmatmul.mubr.bf16.gmra.mrb[0].mxu0 %v264
    %v370 = vpop.f32.mrb[0].mxu0
    %v371 = vadd.f32 %v286, %v370
    %v372 = vpop.f32.mrb[0].mxu0
    %v373 = vpop.f32.mrb[0].mxu0
    %v374 = vadd.f32 %v286, %v373
    %v375 = vpop.f32.mrb[0].mxu0
    %376 = vdwg.mxu0
    %v377 = vpack.c.bf16 %v374, %v371
    %v379 = vunpack.c.l.b16 %v377
    %v380 = vunpack.c.h.b16 %v377
    %v381 = vpack.c.b16 %v379, %v379
    %v382 = vpack.c.b16 %v380, %v380
    %385 = vst [vmem:[#allocation10] sm:$0xf] %v381
    %386 = vst [vmem:[#allocation10 + $0x4] sm:$0xf] %v382
    // Predicated region
    $region42: #{tpu_custom_call.1} parent=1 // pred_check
      _
    $region43: #{tpu_custom_call.1} parent=1 // pred_check_branch
      %388 = sbr.rel (0) target = $region45
    $region44: #{tpu_custom_call.1} parent=1 // pred_region
      %s390 = ssub.s32 128, 128
      %391 = vsyncadd [#allocation4], %s390
      %s392 = sshll.u32 [#allocation10], 4
      %s393 = int_to_ptr.vmem [resolvable:$true] %s392
      %398 = dma.vmem_to_hbm [thread:$0]  %s393, 128, %s6, [#allocation4], 64, 64, 4
    $region45: #{tpu_custom_call.1} parent=1 // pred_fallthru
      _
    // Predicated region
    $region46: #{tpu_custom_call.1} parent=1 // pred_check
      _
    $region47: #{tpu_custom_call.1} parent=1 // pred_check_branch
      %400 = sbr.rel (0) target = $region49
    $region48: #{tpu_custom_call.1} parent=1 // pred_region
      %401 = dma.done [#allocation4], 128
    $region49: #{tpu_custom_call.1} parent=1 // pred_fallthru
      _
    %402 = vsyncpa [#allocation3], 1
    %403 = vsyncpa [#allocation6], 1
    %404 = vsyncpa [#allocation9], 1
    %405 = vsyncpa [#allocation4], 1

</llo_original>
